<compile_context>
chip_gen: v7x
topology: tpu7x:2x2x1
jax: 0.10.0
libtpu: 0.0.40
codegen_flags: <defaults>
</compile_context>

<pallas_src>
import functools

import jax
import jax.numpy as jnp
from jax.experimental import pallas as pl
from jax.experimental.pallas import tpu as pltpu


def _cdiv(a, b):
    return -(-a // b)


def _round_up(a, b):
    return _cdiv(a, b) * b


def _segment_allsum(x, lane_idx, d):
    """Segmented all-reduce sum along lanes: every lane ends up holding the sum of
    its length-`d` contiguous lane segment.  `d` is a power of two (any divisor of
    128) that divides the lane extent.  Butterfly/hypercube exchange: partner lane
    at step s is (lane XOR s), which never crosses a segment boundary, so the
    cyclic-roll wraparound values are always discarded by the select.  Exact f32."""
    L = x.shape[-1]
    s = 1
    while s < d:
        fwd = pltpu.roll(x, L - s, 1)    # lane l <- x[(l + s) % L]
        bwd = pltpu.roll(x, s, 1)        # lane l <- x[(l - s) % L]
        take_fwd = (lane_idx & s) == 0   # bit s clear -> partner is l + s
        x = x + jnp.where(take_fwd, fwd, bwd)
        s *= 2
    return x


def _layernorm_kernel(gamma_ref, beta_ref, x_ref, o_ref, *, d, pack):
    """x_ref/o_ref: (TILE_ROWS, LANE) VMEM tiles.  When pack > 1, each lane row
    carries `pack` consecutive logical rows of width d (lane-dense packing).
    gamma/beta are (1,)-shaped SMEM scalars."""
    x = x_ref[...].astype(jnp.float32)
    gamma = gamma_ref[0]
    beta = beta_ref[0]
    eps = jnp.float32(1e-6)

    if d == 1:
        # Module special-cases size-1 normalized dim: std := 1 and x - mean == 0,
        # so the output is beta everywhere.
        o_ref[...] = (jnp.zeros_like(x) + beta).astype(o_ref.dtype)
        return

    if pack > 1:
        # Lane-dense path: segmented (per-logical-row) statistics along lanes.
        lane_idx = jax.lax.broadcasted_iota(jnp.int32, (1, x.shape[-1]), 1)
        ssum = _segment_allsum(x, lane_idx, d)           # segment sums, all lanes
        mean = ssum * jnp.float32(1.0 / d)
        xc = x - mean
        ssq = _segment_allsum(xc * xc, lane_idx, d)      # centered form (safer numerics)
        var = ssq * jnp.float32(1.0 / (d - 1))           # unbiased, matches torch.std
        std = jnp.sqrt(var)
        inv = pl.reciprocal(std + eps, approx=False)     # approx=True would break 1e-5 tol
        o_ref[...] = (xc * (gamma * inv) + beta).astype(o_ref.dtype)
    else:
        # Plain path (D >= 128 or D does not divide 128): per-row reduction.
        mean = jnp.mean(x, axis=-1, keepdims=True)
        xc = x - mean
        var = jnp.sum(xc * xc, axis=-1, keepdims=True) * jnp.float32(1.0 / (d - 1))
        std = jnp.sqrt(var)
        # Column-sized reciprocal with gamma folded in -> per-element work is one FMA.
        inv = pl.reciprocal(std + eps, approx=False)
        o_ref[...] = (xc * (gamma * inv) + beta).astype(o_ref.dtype)


def _vmem_limit_bytes():
    """Generation-aware scoped-VMEM limit: ~5/8 of physical VMEM, clamped to
    [48 MiB, 80 MiB].  v7x (64 MiB physical) -> 48 MiB; v5e/v6e (128 MiB) -> 80 MiB.
    Falls back to the v7x-safe 48 MiB if the hardware query is unavailable."""
    mib = 1024 * 1024
    try:
        cap = int(pltpu.get_tpu_info().vmem_capacity_bytes)
    except Exception:
        cap = 64 * mib
    return max(48 * mib, min(cap * 5 // 8, 80 * mib))


def _choose_tile_rows(n_rows, lane, itemsize, vmem_limit):
    """Rows per grid step.  The budget counts double-buffered input+output in the
    input dtype PLUS ~4x f32 in-kernel temporaries (x, xc, segment sums, inv), so
    enlarging tiles cannot silently spill — this is the binding constraint on
    v7x's 64 MiB VMEM.  Fewest-steps-that-fit: v5e/v6e have one TensorCore and
    per-step overhead (~0.35 us) is pure loss; the resulting multi-MiB tiles are
    already past the measured ~85% HBM-roofline plateau."""
    m = max(8, 32 // max(1, itemsize))            # sublane multiple: 8 f32 / 16 bf16 / 32 int8
    per_row = lane * (4 * itemsize + 4 * 4)       # 2x(in+out) double-buffered + ~4x f32 temps
    budget = vmem_limit // 2                      # headroom for compiler scratch / pipelining
    t = max(m, (budget // max(1, per_row)) // m * m)
    if t >= n_rows:
        return n_rows                             # one full-array block (always layout-legal)
    return t                                      # multiple of m; Pallas masks the partial last block


def layer_norm_pallas(x, gamma, beta):
    """LayerNorm with scalar gamma/beta over the last axis of x (any leading dims)."""
    # Lane-dense packing is only legal because gamma/beta are scalars (not per-feature).
    assert gamma.size == 1 and beta.size == 1, "scalar affine required for lane-dense packing"

    orig_shape = x.shape
    d = int(orig_shape[-1])
    rows = 1
    for s in orig_shape[:-1]:
        rows *= int(s)
    x2 = x.reshape(rows, d)

    # Lane-dense repacking: `pack` consecutive logical rows share one 128-lane row
    # whenever d divides 128, so stores are full-width vst instead of masked vst.msk.
    pack = (128 // d) if (d < 128 and 128 % d == 0) else 1
    lane = d * pack

    # Pad ONLY to a multiple of `pack` (a handful of rows, and only when needed).
    # No padding to a tile multiple: the grid uses cdiv and Pallas masks the partial
    # last block on writeback; garbage in that block never feeds a cross-row reduce.
    rows_pad = _round_up(rows, pack)
    if rows_pad != rows:
        x2 = jnp.pad(x2, ((0, rows_pad - rows), (0, 0)))
    n_packed = rows_pad // pack
    xk = x2.reshape(n_packed, lane)   # contiguous row-major reshape: free

    itemsize = jnp.dtype(x.dtype).itemsize
    vmem_limit = _vmem_limit_bytes()
    tile_rows = _choose_tile_rows(n_packed, lane, itemsize, vmem_limit)
    grid = (_cdiv(n_packed, tile_rows),)

    kernel = functools.partial(_layernorm_kernel, d=d, pack=pack)

    out = pl.pallas_call(
        kernel,
        out_shape=jax.ShapeDtypeStruct((n_packed, lane), x.dtype),
        grid_spec=pltpu.PrefetchScalarGridSpec(
            num_scalar_prefetch=0,
            grid=grid,
            in_specs=[
                pl.BlockSpec(memory_space=pltpu.MemorySpace.SMEM),   # gamma (1,)
                pl.BlockSpec(memory_space=pltpu.MemorySpace.SMEM),   # beta  (1,)
                pl.BlockSpec((tile_rows, lane), lambda i: (i, 0)),
            ],
            out_specs=pl.BlockSpec((tile_rows, lane), lambda i: (i, 0)),
        ),
        compiler_params=pltpu.CompilerParams(
            dimension_semantics=("parallel",),
            vmem_limit_bytes=vmem_limit,
        ),
    )(gamma, beta, xk)

    out = out.reshape(rows_pad, d)
    if rows_pad != rows:
        out = out[:rows]
    return out.reshape(orig_shape)


if __name__ == "__main__":
    key = jax.random.PRNGKey(0)

    # Small shapes consistent with the module: batch=2, seq=8, hidden=32.
    B, S, D = 2, 8, 32
    x = jax.random.normal(key, (B, S, D), dtype=jnp.float32)

    # Deterministic parameter init, mirroring __init__(gamma):
    #   self.gamma = gamma * ones(1); self.beta = zeros(1)
    gamma_scale = 2.0
    gamma = jnp.full((1,), gamma_scale, dtype=jnp.float32)
    beta = jnp.zeros((1,), dtype=jnp.float32)

    y = layer_norm_pallas(x, gamma, beta)
    y = jax.block_until_ready(y)

    # Pure-JAX reference (unbiased std, matching torch.std default).
    mean = jnp.mean(x, axis=-1, keepdims=True)
    var = jnp.sum((x - mean) ** 2, axis=-1, keepdims=True) / (D - 1)
    std = jnp.sqrt(var)
    y_ref = gamma_scale * (x - mean) / (std + 1e-6) + 0.0

    assert y.shape == x.shape and y.dtype == x.dtype
    assert jnp.allclose(y, y_ref, atol=1e-5, rtol=1e-5)

    print("KERNEL_OK")
</pallas_src>

<mosaic_0001>
module attributes {stable_mosaic.version = 11 : i64} {
  func.func @_layernorm_kernel(%arg0: i32, %arg1: memref<1xf32, #tpu.memory_space<smem>>, %arg2: memref<1xf32, #tpu.memory_space<smem>>, %arg3: memref<4x128xf32, #tpu.memory_space<vmem>>, %arg4: memref<4x128xf32, #tpu.memory_space<vmem>>) attributes {dimension_semantics = [#tpu.dimension_semantics<parallel>], iteration_bounds = array<i64: 1>, scalar_prefetch = 0 : i64, scratch_operands = 0 : i64, tpu.core_type = #tpu.core_type<tc>, window_params = [{transform_indices = @transform_0, window_bounds = array<i64: 1>}, {transform_indices = @transform_1, window_bounds = array<i64: 1>}, {transform_indices = @transform_2, window_bounds = array<i64: 4, 128>}, {transform_indices = @transform_3, window_bounds = array<i64: 4, 128>}]} {
    %c0 = arith.constant 0 : index
    %c0_0 = arith.constant 0 : index
    %0 = vector.load %arg3[%c0, %c0_0] : memref<4x128xf32, #tpu.memory_space<vmem>>, vector<4x128xf32>
    %c0_1 = arith.constant 0 : index
    %1 = memref.load %arg1[%c0_1] : memref<1xf32, #tpu.memory_space<smem>>
    %c0_2 = arith.constant 0 : index
    %2 = memref.load %arg2[%c0_2] : memref<1xf32, #tpu.memory_space<smem>>
    %3 = tpu.iota {dimensions = array<i32: 1>} : vector<1x128xi32>
    %c127_i32 = arith.constant 127 : i32
    %4 = tpu.dynamic_rotate %0 by %c127_i32 dim 1 : vector<4x128xf32>, i32 -> vector<4x128xf32>
    %c1_i32 = arith.constant 1 : i32
    %5 = tpu.dynamic_rotate %0 by %c1_i32 dim 1 : vector<4x128xf32>, i32 -> vector<4x128xf32>
    %c1_i32_3 = arith.constant 1 : i32
    %6 = vector.broadcast %c1_i32_3 : i32 to vector<1x128xi32>
    %7 = arith.andi %3, %6 : vector<1x128xi32>
    %c0_i32 = arith.constant 0 : i32
    %8 = vector.broadcast %c0_i32 : i32 to vector<1x128xi32>
    %9 = arith.cmpi eq, %7, %8 : vector<1x128xi32>
    %10 = vector.shape_cast %9 : vector<1x128xi1> to vector<1x128xi1>
    %11 = vector.broadcast %10 : vector<1x128xi1> to vector<4x128xi1>
    %12 = arith.select %11, %4, %5 : vector<4x128xi1>, vector<4x128xf32>
    %13 = arith.addf %0, %12 : vector<4x128xf32>
    %c126_i32 = arith.constant 126 : i32
    %14 = tpu.dynamic_rotate %13 by %c126_i32 dim 1 : vector<4x128xf32>, i32 -> vector<4x128xf32>
    %c2_i32 = arith.constant 2 : i32
    %15 = tpu.dynamic_rotate %13 by %c2_i32 dim 1 : vector<4x128xf32>, i32 -> vector<4x128xf32>
    %c2_i32_4 = arith.constant 2 : i32
    %16 = vector.broadcast %c2_i32_4 : i32 to vector<1x128xi32>
    %17 = arith.andi %3, %16 : vector<1x128xi32>
    %c0_i32_5 = arith.constant 0 : i32
    %18 = vector.broadcast %c0_i32_5 : i32 to vector<1x128xi32>
    %19 = arith.cmpi eq, %17, %18 : vector<1x128xi32>
    %20 = vector.shape_cast %19 : vector<1x128xi1> to vector<1x128xi1>
    %21 = vector.broadcast %20 : vector<1x128xi1> to vector<4x128xi1>
    %22 = arith.select %21, %14, %15 : vector<4x128xi1>, vector<4x128xf32>
    %23 = arith.addf %13, %22 : vector<4x128xf32>
    %c124_i32 = arith.constant 124 : i32
    %24 = tpu.dynamic_rotate %23 by %c124_i32 dim 1 : vector<4x128xf32>, i32 -> vector<4x128xf32>
    %c4_i32 = arith.constant 4 : i32
    %25 = tpu.dynamic_rotate %23 by %c4_i32 dim 1 : vector<4x128xf32>, i32 -> vector<4x128xf32>
    %c4_i32_6 = arith.constant 4 : i32
    %26 = vector.broadcast %c4_i32_6 : i32 to vector<1x128xi32>
    %27 = arith.andi %3, %26 : vector<1x128xi32>
    %c0_i32_7 = arith.constant 0 : i32
    %28 = vector.broadcast %c0_i32_7 : i32 to vector<1x128xi32>
    %29 = arith.cmpi eq, %27, %28 : vector<1x128xi32>
    %30 = vector.shape_cast %29 : vector<1x128xi1> to vector<1x128xi1>
    %31 = vector.broadcast %30 : vector<1x128xi1> to vector<4x128xi1>
    %32 = arith.select %31, %24, %25 : vector<4x128xi1>, vector<4x128xf32>
    %33 = arith.addf %23, %32 : vector<4x128xf32>
    %c120_i32 = arith.constant 120 : i32
    %34 = tpu.dynamic_rotate %33 by %c120_i32 dim 1 : vector<4x128xf32>, i32 -> vector<4x128xf32>
    %c8_i32 = arith.constant 8 : i32
    %35 = tpu.dynamic_rotate %33 by %c8_i32 dim 1 : vector<4x128xf32>, i32 -> vector<4x128xf32>
    %c8_i32_8 = arith.constant 8 : i32
    %36 = vector.broadcast %c8_i32_8 : i32 to vector<1x128xi32>
    %37 = arith.andi %3, %36 : vector<1x128xi32>
    %c0_i32_9 = arith.constant 0 : i32
    %38 = vector.broadcast %c0_i32_9 : i32 to vector<1x128xi32>
    %39 = arith.cmpi eq, %37, %38 : vector<1x128xi32>
    %40 = vector.shape_cast %39 : vector<1x128xi1> to vector<1x128xi1>
    %41 = vector.broadcast %40 : vector<1x128xi1> to vector<4x128xi1>
    %42 = arith.select %41, %34, %35 : vector<4x128xi1>, vector<4x128xf32>
    %43 = arith.addf %33, %42 : vector<4x128xf32>
    %c112_i32 = arith.constant 112 : i32
    %44 = tpu.dynamic_rotate %43 by %c112_i32 dim 1 : vector<4x128xf32>, i32 -> vector<4x128xf32>
    %c16_i32 = arith.constant 16 : i32
    %45 = tpu.dynamic_rotate %43 by %c16_i32 dim 1 : vector<4x128xf32>, i32 -> vector<4x128xf32>
    %c16_i32_10 = arith.constant 16 : i32
    %46 = vector.broadcast %c16_i32_10 : i32 to vector<1x128xi32>
    %47 = arith.andi %3, %46 : vector<1x128xi32>
    %c0_i32_11 = arith.constant 0 : i32
    %48 = vector.broadcast %c0_i32_11 : i32 to vector<1x128xi32>
    %49 = arith.cmpi eq, %47, %48 : vector<1x128xi32>
    %50 = vector.shape_cast %49 : vector<1x128xi1> to vector<1x128xi1>
    %51 = vector.broadcast %50 : vector<1x128xi1> to vector<4x128xi1>
    %52 = arith.select %51, %44, %45 : vector<4x128xi1>, vector<4x128xf32>
    %53 = arith.addf %43, %52 : vector<4x128xf32>
    %cst = arith.constant 3.125000e-02 : f32
    %54 = vector.broadcast %cst : f32 to vector<4x128xf32>
    %55 = arith.mulf %53, %54 : vector<4x128xf32>
    %56 = arith.subf %0, %55 : vector<4x128xf32>
    %57 = arith.mulf %56, %56 : vector<4x128xf32>
    %c127_i32_12 = arith.constant 127 : i32
    %58 = tpu.dynamic_rotate %57 by %c127_i32_12 dim 1 : vector<4x128xf32>, i32 -> vector<4x128xf32>
    %c1_i32_13 = arith.constant 1 : i32
    %59 = tpu.dynamic_rotate %57 by %c1_i32_13 dim 1 : vector<4x128xf32>, i32 -> vector<4x128xf32>
    %c1_i32_14 = arith.constant 1 : i32
    %60 = vector.broadcast %c1_i32_14 : i32 to vector<1x128xi32>
    %61 = arith.andi %3, %60 : vector<1x128xi32>
    %c0_i32_15 = arith.constant 0 : i32
    %62 = vector.broadcast %c0_i32_15 : i32 to vector<1x128xi32>
    %63 = arith.cmpi eq, %61, %62 : vector<1x128xi32>
    %64 = vector.shape_cast %63 : vector<1x128xi1> to vector<1x128xi1>
    %65 = vector.broadcast %64 : vector<1x128xi1> to vector<4x128xi1>
    %66 = arith.select %65, %58, %59 : vector<4x128xi1>, vector<4x128xf32>
    %67 = arith.addf %57, %66 : vector<4x128xf32>
    %c126_i32_16 = arith.constant 126 : i32
    %68 = tpu.dynamic_rotate %67 by %c126_i32_16 dim 1 : vector<4x128xf32>, i32 -> vector<4x128xf32>
    %c2_i32_17 = arith.constant 2 : i32
    %69 = tpu.dynamic_rotate %67 by %c2_i32_17 dim 1 : vector<4x128xf32>, i32 -> vector<4x128xf32>
    %c2_i32_18 = arith.constant 2 : i32
    %70 = vector.broadcast %c2_i32_18 : i32 to vector<1x128xi32>
    %71 = arith.andi %3, %70 : vector<1x128xi32>
    %c0_i32_19 = arith.constant 0 : i32
    %72 = vector.broadcast %c0_i32_19 : i32 to vector<1x128xi32>
    %73 = arith.cmpi eq, %71, %72 : vector<1x128xi32>
    %74 = vector.shape_cast %73 : vector<1x128xi1> to vector<1x128xi1>
    %75 = vector.broadcast %74 : vector<1x128xi1> to vector<4x128xi1>
    %76 = arith.select %75, %68, %69 : vector<4x128xi1>, vector<4x128xf32>
    %77 = arith.addf %67, %76 : vector<4x128xf32>
    %c124_i32_20 = arith.constant 124 : i32
    %78 = tpu.dynamic_rotate %77 by %c124_i32_20 dim 1 : vector<4x128xf32>, i32 -> vector<4x128xf32>
    %c4_i32_21 = arith.constant 4 : i32
    %79 = tpu.dynamic_rotate %77 by %c4_i32_21 dim 1 : vector<4x128xf32>, i32 -> vector<4x128xf32>
    %c4_i32_22 = arith.constant 4 : i32
    %80 = vector.broadcast %c4_i32_22 : i32 to vector<1x128xi32>
    %81 = arith.andi %3, %80 : vector<1x128xi32>
    %c0_i32_23 = arith.constant 0 : i32
    %82 = vector.broadcast %c0_i32_23 : i32 to vector<1x128xi32>
    %83 = arith.cmpi eq, %81, %82 : vector<1x128xi32>
    %84 = vector.shape_cast %83 : vector<1x128xi1> to vector<1x128xi1>
    %85 = vector.broadcast %84 : vector<1x128xi1> to vector<4x128xi1>
    %86 = arith.select %85, %78, %79 : vector<4x128xi1>, vector<4x128xf32>
    %87 = arith.addf %77, %86 : vector<4x128xf32>
    %c120_i32_24 = arith.constant 120 : i32
    %88 = tpu.dynamic_rotate %87 by %c120_i32_24 dim 1 : vector<4x128xf32>, i32 -> vector<4x128xf32>
    %c8_i32_25 = arith.constant 8 : i32
    %89 = tpu.dynamic_rotate %87 by %c8_i32_25 dim 1 : vector<4x128xf32>, i32 -> vector<4x128xf32>
    %c8_i32_26 = arith.constant 8 : i32
    %90 = vector.broadcast %c8_i32_26 : i32 to vector<1x128xi32>
    %91 = arith.andi %3, %90 : vector<1x128xi32>
    %c0_i32_27 = arith.constant 0 : i32
    %92 = vector.broadcast %c0_i32_27 : i32 to vector<1x128xi32>
    %93 = arith.cmpi eq, %91, %92 : vector<1x128xi32>
    %94 = vector.shape_cast %93 : vector<1x128xi1> to vector<1x128xi1>
    %95 = vector.broadcast %94 : vector<1x128xi1> to vector<4x128xi1>
    %96 = arith.select %95, %88, %89 : vector<4x128xi1>, vector<4x128xf32>
    %97 = arith.addf %87, %96 : vector<4x128xf32>
    %c112_i32_28 = arith.constant 112 : i32
    %98 = tpu.dynamic_rotate %97 by %c112_i32_28 dim 1 : vector<4x128xf32>, i32 -> vector<4x128xf32>
    %c16_i32_29 = arith.constant 16 : i32
    %99 = tpu.dynamic_rotate %97 by %c16_i32_29 dim 1 : vector<4x128xf32>, i32 -> vector<4x128xf32>
    %c16_i32_30 = arith.constant 16 : i32
    %100 = vector.broadcast %c16_i32_30 : i32 to vector<1x128xi32>
    %101 = arith.andi %3, %100 : vector<1x128xi32>
    %c0_i32_31 = arith.constant 0 : i32
    %102 = vector.broadcast %c0_i32_31 : i32 to vector<1x128xi32>
    %103 = arith.cmpi eq, %101, %102 : vector<1x128xi32>
    %104 = vector.shape_cast %103 : vector<1x128xi1> to vector<1x128xi1>
    %105 = vector.broadcast %104 : vector<1x128xi1> to vector<4x128xi1>
    %106 = arith.select %105, %98, %99 : vector<4x128xi1>, vector<4x128xf32>
    %107 = arith.addf %97, %106 : vector<4x128xf32>
    %cst_32 = arith.constant 0.0322580636 : f32
    %108 = vector.broadcast %cst_32 : f32 to vector<4x128xf32>
    %109 = arith.mulf %107, %108 : vector<4x128xf32>
    %110 = math.sqrt %109 : vector<4x128xf32>
    %cst_33 = arith.constant 9.99999997E-7 : f32
    %111 = vector.broadcast %cst_33 : f32 to vector<4x128xf32>
    %112 = arith.addf %110, %111 : vector<4x128xf32>
    %113 = tpu.reciprocal %112 : vector<4x128xf32> -> vector<4x128xf32>
    %114 = vector.broadcast %1 : f32 to vector<4x128xf32>
    %115 = arith.mulf %114, %113 : vector<4x128xf32>
    %116 = arith.mulf %56, %115 : vector<4x128xf32>
    %117 = vector.broadcast %2 : f32 to vector<4x128xf32>
    %118 = arith.addf %116, %117 : vector<4x128xf32>
    %c0_34 = arith.constant 0 : index
    %c0_35 = arith.constant 0 : index
    %119 = vector.load %arg4[%c0_34, %c0_35] : memref<4x128xf32, #tpu.memory_space<vmem>>, vector<4x128xf32>
    tpu.vector_store %arg4[%c0_34, %c0_35], %118 {strides = array<i32>} : memref<4x128xf32, #tpu.memory_space<vmem>>, vector<4x128xf32>,
    return
  }
  func.func @transform_0(%arg0: i32) -> i32 {
    %c0_i32 = arith.constant 0 : i32
    %c0_i32_0 = arith.constant 0 : i32
    return %c0_i32 : i32
  }
  func.func @transform_1(%arg0: i32) -> i32 {
    %c0_i32 = arith.constant 0 : i32
    %c0_i32_0 = arith.constant 0 : i32
    return %c0_i32 : i32
  }
  func.func @transform_2(%arg0: i32) -> (i32, i32) {
    %c0_i32 = arith.constant 0 : i32
    %c0_i32_0 = arith.constant 0 : i32
    return %arg0, %c0_i32 : i32, i32
  }
  func.func @transform_3(%arg0: i32) -> (i32, i32) {
    %c0_i32 = arith.constant 0 : i32
    %c0_i32_0 = arith.constant 0 : i32
    return %arg0, %c0_i32 : i32, i32
  }
}

</mosaic_0001>

<llo_original>
// kernel: tpu_custom_call.1
$region0: #{tpu_custom_call.1}
  #allocation0 [shape = 'u32[]', space=smem, size = 0x4, offset = 0x4, fixed_abs, tag = 'smem constant byte address 0x4 - core index']
  #allocation1 [shape = 'u32[144,128]{1,0:T(1,128)}', space=vmem, size = 0x12000, scoped, tag = 'internal scratch']
  #allocation2 [shape = 'f32[1]{0:T(128)S(6)}', space=smem, size = 0x200, scoped, tag = 'scoped memory for tpu_custom_call.1']
  #allocation3 [shape = 'f32[1]{0:T(128)S(6)}', space=smem, size = 0x200, scoped, tag = 'scoped memory for tpu_custom_call.1']
  %s0 = inlined_call_operand.<no memory space> [shape: f32[1], index: 0, kind: input, shape index: {}]
  %s1 = inlined_call_operand.<no memory space> [shape: f32[1], index: 1, kind: input, shape index: {}]
  %s2 = inlined_call_operand.vmem [shape: f32[4,128], index: 2, kind: input, shape index: {}]
  %s3 = inlined_call_operand.hbm [shape: f32[4,128], index: 3, kind: output, shape index: {}]
  %s4 = sld [smem:[#allocation0]]
  $region22: #{tpu_custom_call.1} parent=0
    _
  %s6 = ssub.s32 1, %s4
  %s7 = scalar_select 0, %s6, %s4
  %8 = sst [smem:[#allocation2]] %s0
  %9 = sst [smem:[#allocation3]] %s1
  $region1: #{tpu_custom_call.1} parent=0
    #allocation4 [shape = 'u8[2048]{0}', space=vmem, size = 0x800, scoped, tag = 'output window, operand 0, single buffered']
    #allocation5 [shape = 's32[1]{0}', space=sflag, size = 0x4, scoped, tag = 'scoped memory for tpu_custom_call.1']
    %10 = vsyncpa [#allocation5], 0
    // Predicated region
    $region2: #{tpu_custom_call.1} parent=1 // pred_check
      _
    $region3: #{tpu_custom_call.1} parent=1 // pred_check_branch
      %12 = sbr.rel (0) target = $region5
    $region4: #{tpu_custom_call.1} parent=1 // pred_region
      _
    $region5: #{tpu_custom_call.1} parent=1 // pred_fallthru
      _
    // Predicated region
    $region6: #{tpu_custom_call.1} parent=1 // pred_check
      _
    $region7: #{tpu_custom_call.1} parent=1 // pred_check_branch
      %14 = sbr.rel (0) target = $region9
    $region8: #{tpu_custom_call.1} parent=1 // pred_region
      _
    $region9: #{tpu_custom_call.1} parent=1 // pred_fallthru
      _
    // Predicated region
    $region10: #{tpu_custom_call.1} parent=1 // pred_check
      _
    $region11: #{tpu_custom_call.1} parent=1 // pred_check_branch
      %16 = sbr.rel (0) target = $region13
    $region12: #{tpu_custom_call.1} parent=1 // pred_region
      _
    $region13: #{tpu_custom_call.1} parent=1 // pred_fallthru
      _
    %v17 = vld [vmem:[%s2] sm:$0xf]
    %s18 = sld [smem:[#allocation2]]
    %s19 = sld [smem:[#allocation3]]
    %v20 = vlaneseq
    %v21 = vand.u32 %v20, 127
    %22 = vrot.lane.b32.xlu0 %v17, 127
    %v23 = vpop.permute.xlu0 %22
    %24 = vrot.lane.b32.xlu0 %v17, 1
    %v25 = vpop.permute.xlu0 %24
    %v26 = vand.u32 %v21, 1
    %vm27 = vcmp.eq.s32.totalorder %v26, 0
    %v28 = vsel %vm27, 1, 0
    %vm29 = vcmp.eq.s32.totalorder %v28, 1
    %v30 = vsel %vm29, %v23, %v25
    %v31 = vadd.f32 %v17, %v30
    %32 = vrot.lane.b32.xlu0 %v31, 126
    %v33 = vpop.permute.xlu0 %32
    %34 = vrot.lane.b32.xlu0 %v31, 2
    %v35 = vpop.permute.xlu0 %34
    %v36 = vand.u32 %v21, 2
    %vm37 = vcmp.eq.s32.totalorder %v36, 0
    %v38 = vsel %vm37, 1, 0
    %vm39 = vcmp.eq.s32.totalorder %v38, 1
    %v40 = vsel %vm39, %v33, %v35
    %v41 = vadd.f32 %v31, %v40
    %42 = vrot.lane.b32.xlu0 %v41, 124
    %v43 = vpop.permute.xlu0 %42
    %44 = vrot.lane.b32.xlu0 %v41, 4
    %v45 = vpop.permute.xlu0 %44
    %v46 = vand.u32 %v21, 4
    %vm47 = vcmp.eq.s32.totalorder %v46, 0
    %v48 = vsel %vm47, 1, 0
    %vm49 = vcmp.eq.s32.totalorder %v48, 1
    %v50 = vsel %vm49, %v43, %v45
    %v51 = vadd.f32 %v41, %v50
    %52 = vrot.lane.b32.xlu0 %v51, 120
    %v53 = vpop.permute.xlu0 %52
    %54 = vrot.lane.b32.xlu0 %v51, 8
    %v55 = vpop.permute.xlu0 %54
    %v56 = vand.u32 %v21, 8
    %vm57 = vcmp.eq.s32.totalorder %v56, 0
    %v58 = vsel %vm57, 1, 0
    %vm59 = vcmp.eq.s32.totalorder %v58, 1
    %v60 = vsel %vm59, %v53, %v55
    %v61 = vadd.f32 %v51, %v60
    %62 = vrot.lane.b32.xlu0 %v61, 112
    %v63 = vpop.permute.xlu0 %62
    %64 = vrot.lane.b32.xlu0 %v61, 16
    %v65 = vpop.permute.xlu0 %64
    %v66 = vand.u32 %v21, 16
    %vm67 = vcmp.eq.s32.totalorder %v66, 0
    %v68 = vsel %vm67, 1, 0
    %vm69 = vcmp.eq.s32.totalorder %v68, 1
    %v70 = vsel %vm69, %v63, %v65
    %v71 = vadd.f32 %v61, %v70
    %v72 = vmul.f32 %v71, 0.03125
    %v73 = vsub.f32 %v17, %v72
    %v74 = vmul.f32 %v73, %v73
    %75 = vrot.lane.b32.xlu0 %v74, 127
    %v76 = vpop.permute.xlu0 %75
    %77 = vrot.lane.b32.xlu0 %v74, 1
    %v78 = vpop.permute.xlu0 %77
    %v79 = vsel %vm29, %v76, %v78
    %v80 = vadd.f32 %v74, %v79
    %81 = vrot.lane.b32.xlu0 %v80, 126
    %v82 = vpop.permute.xlu0 %81
    %83 = vrot.lane.b32.xlu0 %v80, 2
    %v84 = vpop.permute.xlu0 %83
    %v85 = vsel %vm39, %v82, %v84
    %v86 = vadd.f32 %v80, %v85
    %87 = vrot.lane.b32.xlu0 %v86, 124
    %v88 = vpop.permute.xlu0 %87
    %89 = vrot.lane.b32.xlu0 %v86, 4
    %v90 = vpop.permute.xlu0 %89
    %v91 = vsel %vm49, %v88, %v90
    %v92 = vadd.f32 %v86, %v91
    %93 = vrot.lane.b32.xlu0 %v92, 120
    %v94 = vpop.permute.xlu0 %93
    %95 = vrot.lane.b32.xlu0 %v92, 8
    %v96 = vpop.permute.xlu0 %95
    %v97 = vsel %vm59, %v94, %v96
    %v98 = vadd.f32 %v92, %v97
    %99 = vrot.lane.b32.xlu0 %v98, 112
    %v100 = vpop.permute.xlu0 %99
    %101 = vrot.lane.b32.xlu0 %v98, 16
    %v102 = vpop.permute.xlu0 %101
    %v103 = vsel %vm69, %v100, %v102
    %v104 = vadd.f32 %v98, %v103
    %v105 = vmul.f32 %v104, 0.032258064
    %v106 = vrsqrt.pop %v105
    %v107 = vmul.f32 %v105, %v106
    %vm108 = vcmp.eq.f32.partialorder %v105, inf
    %v109 = vsel %vm108, %v105, %v107
    %vm110 = vcmp.eq.f32.partialorder %v105, 0.0
    %v111 = vand.u32 %v105, 2147483648
    %v112 = vsel %vm110, %v111, %v109
    %v113 = vadd.f32 %v112, 1e-06
    %v114 = vrcp.pop %v113
    %v115 = vstv %s18
    %v116 = vmul.f32 %v115, %v114
    %v117 = vmul.f32 %v73, %v116
    %v118 = vstv %s19
    %v119 = vadd.f32 %v117, %v118
    %120 = vst [vmem:[#allocation4] sm:$0xf] %v119
    // Predicated region
    $region14: #{tpu_custom_call.1} parent=1 // pred_check
      _
    $region15: #{tpu_custom_call.1} parent=1 // pred_check_branch
      %122 = sbr.rel (0) target = $region17
    $region16: #{tpu_custom_call.1} parent=1 // pred_region
      %s124 = ssub.s32 64, 64
      %125 = vsyncadd [#allocation5], %s124
      %s127 = sshll.u32 [#allocation4], 4
      %s128 = int_to_ptr.vmem [resolvable:$true] %s127
      %130 = dma.vmem_to_hbm [thread:$0]  %s128, 64, %s3, [#allocation5]
    $region17: #{tpu_custom_call.1} parent=1 // pred_fallthru
      _
    // Predicated region
    $region18: #{tpu_custom_call.1} parent=1 // pred_check
      _
    $region19: #{tpu_custom_call.1} parent=1 // pred_check_branch
      %132 = sbr.rel (0) target = $region21
    $region20: #{tpu_custom_call.1} parent=1 // pred_region
      %133 = dma.done [#allocation5], 64
    $region21: #{tpu_custom_call.1} parent=1 // pred_fallthru
      _
    %134 = vsyncpa [#allocation5], 1

</llo_original>
